<compile_context>
chip_gen: v7x
topology: tpu7x:2x2x1
jax: 0.10.0
libtpu: 0.0.40
codegen_flags: <defaults>
</compile_context>

<pallas_src>
import functools

import jax
import jax.numpy as jnp
from jax import lax
from jax.experimental import pallas as pl
from jax.experimental.pallas import tpu as pltpu

_LANE = 128
_MIB = 1024 * 1024


# ----------------------------- helpers ------------------------------------


def _round_up(x, m):
    return ((x + m - 1) // m) * m


def _vmem_limit_bytes():
    """Generation-aware scoped-VMEM limit (~3/4 of physical VMEM)."""
    cap = 64 * _MIB                      # conservative default (v7x physical)
    try:
        info = pltpu.get_tpu_info()
        cap = int(getattr(info, "vmem_capacity_bytes", cap) or cap)
    except Exception:
        pass
    return max(32 * _MIB, min(cap * 3 // 4, 112 * _MIB))


def _cp(vmem_limit, n_parallel=0):
    kwargs = dict(vmem_limit_bytes=int(vmem_limit))
    if n_parallel:
        kwargs["dimension_semantics"] = ("parallel",) * n_parallel
    return pltpu.CompilerParams(**kwargs)


def _pick_row_tile(n_rows, per_row_bytes, budget):
    """Largest row tile (multiple of 8) whose working set fits `budget`."""
    tm = max(8, min(int(budget // max(per_row_bytes, 1)), 2048,
                    _round_up(n_rows, 8)))
    tm = (tm // 8) * 8
    # Prefer an even number of grid steps on small grids (v7x has 2 TCs).
    steps = pl.cdiv(n_rows, tm)
    if 1 < steps <= 8 and steps % 2 == 1:
        steps += 1
        tm = max(8, _round_up(pl.cdiv(n_rows, steps), 8))
    return tm


# ----------------------------- kernels ------------------------------------


def _add_diag(adj):
    """adj + I for the current row tile (global diagonal), no N x N eye."""
    tm = adj.shape[0]
    row0 = pl.program_id(0) * tm
    r = lax.broadcasted_iota(jnp.int32, adj.shape, 0) + row0
    c = lax.broadcasted_iota(jnp.int32, adj.shape, 1)
    return adj + (r == c).astype(adj.dtype)


def _degree_kernel(a_ref, d_ref, *, add_self_loops):
    """Pass 1 (streaming SymNorm): d = rsqrt(row degree), shape (TM, 1)."""
    adj = a_ref[...].astype(jnp.float32)
    s = jnp.sum(adj, axis=1, keepdims=True)
    if add_self_loops:
        s = s + 1.0
    d_ref[...] = jnp.where(s > 0, lax.rsqrt(s), 0.0)


def _sym_scale_kernel(a_ref, dr_ref, dc_ref, o_ref, *, add_self_loops):
    """Pass 2 (streaming SymNorm): out = d_row * (A [+ I]) * d_col."""
    adj = a_ref[...].astype(jnp.float32)
    if add_self_loops:
        adj = _add_diag(adj)
    o_ref[...] = ((dr_ref[...] * adj) * dc_ref[...]).astype(o_ref.dtype)


def _sym_fused_kernel(a_ref, o_ref, *, add_self_loops):
    """Fused SymNorm: single HBM read of A, degree + scale in one kernel."""
    n = a_ref.shape[0]
    adj = a_ref[...].astype(jnp.float32)
    r = lax.broadcasted_iota(jnp.int32, (n, n), 0)
    c = lax.broadcasted_iota(jnp.int32, (n, n), 1)
    diag = r == c
    if add_self_loops:
        adj = adj + diag.astype(jnp.float32)
    s = jnp.sum(adj, axis=1, keepdims=True)           # (n, 1) row degrees
    d = jnp.where(s > 0, lax.rsqrt(s), 0.0)           # (n, 1)
    # Lane-major copy of d (shape (1, n)) without an in-kernel transpose:
    # embed d on the diagonal and reduce over sublanes.
    d_col = jnp.sum(jnp.where(diag, d, 0.0), axis=0, keepdims=True)
    o_ref[...] = ((d * adj) * d_col).astype(o_ref.dtype)


def _left_norm_kernel(a_ref, o_ref, *, add_self_loops):
    """Single pass: row degrees are local to the row tile."""
    adj = a_ref[...].astype(jnp.float32)
    if add_self_loops:
        adj = _add_diag(adj)
    s = jnp.sum(adj, axis=1, keepdims=True)
    d_inv = jnp.where(s != 0, 1.0 / s, 0.0)
    o_ref[...] = (d_inv * adj).astype(o_ref.dtype)


def _identity_kernel(o_ref):
    """Writes the identity tile directly from iota; no HBM read at all."""
    tm, n = o_ref.shape
    row0 = pl.program_id(0) * tm
    r = lax.broadcasted_iota(jnp.int32, (tm, n), 0) + row0
    c = lax.broadcasted_iota(jnp.int32, (tm, n), 1)
    o_ref[...] = (r == c).astype(o_ref.dtype)


# ------------------------- pallas_call wrappers ----------------------------


def _sym_fused(mx, *, add_self_loops, limit, out_dtype):
    n = mx.shape[0]
    return pl.pallas_call(
        functools.partial(_sym_fused_kernel, add_self_loops=add_self_loops),
        out_shape=jax.ShapeDtypeStruct((n, n), out_dtype),
        compiler_params=_cp(limit),
    )(mx)


def _sym_norm_streaming(mx, *, add_self_loops, limit, budget,
                        out_dtype=jnp.float32):
    n = mx.shape[0]
    n_c = _round_up(n, _LANE)                 # internal lane padding (accounting)
    in_isz = jnp.dtype(mx.dtype).itemsize
    out_isz = jnp.dtype(out_dtype).itemsize

    # Pass 1: d = rsqrt(row degree) as an (n, 1) vector.  Only the input tile
    # is large here, so it gets its own, bigger row tile.
    tm_d = _pick_row_tile(n, n_c * (2 * in_isz + 4), budget)
    d = pl.pallas_call(
        functools.partial(_degree_kernel, add_self_loops=add_self_loops),
        out_shape=jax.ShapeDtypeStruct((n, 1), jnp.float32),
        grid=(pl.cdiv(n, tm_d),),
        in_specs=[pl.BlockSpec((tm_d, n), lambda i: (i, 0))],
        out_specs=pl.BlockSpec((tm_d, 1), lambda i: (i, 0)),
        compiler_params=_cp(limit, 1),
    )(mx)
    d_col = d.reshape(1, n)                   # O(N) relayout outside the kernel

    # Pass 2: out = d_row * (A [+ I]) * d_col, streamed over row tiles.
    tm = _pick_row_tile(n, n_c * (2 * in_isz + 2 * out_isz + 4), budget)
    return pl.pallas_call(
        functools.partial(_sym_scale_kernel, add_self_loops=add_self_loops),
        out_shape=jax.ShapeDtypeStruct((n, n), out_dtype),
        grid=(pl.cdiv(n, tm),),
        in_specs=[
            pl.BlockSpec((tm, n), lambda i: (i, 0)),   # adjacency row tile
            pl.BlockSpec((tm, 1), lambda i: (i, 0)),   # row-scale slice
            pl.BlockSpec((1, n), lambda i: (0, 0)),    # full column scale
        ],
        out_specs=pl.BlockSpec((tm, n), lambda i: (i, 0)),
        compiler_params=_cp(limit, 1),
    )(mx, d, d_col)


def _left_norm(mx, *, limit, budget, out_dtype=jnp.float32):
    n = mx.shape[0]
    n_c = _round_up(n, _LANE)
    in_isz = jnp.dtype(mx.dtype).itemsize
    out_isz = jnp.dtype(out_dtype).itemsize
    tm = _pick_row_tile(n, n_c * (2 * in_isz + 2 * out_isz + 4), budget)
    return pl.pallas_call(
        functools.partial(_left_norm_kernel, add_self_loops=True),
        out_shape=jax.ShapeDtypeStruct((n, n), out_dtype),
        grid=(pl.cdiv(n, tm),),
        in_specs=[pl.BlockSpec((tm, n), lambda i: (i, 0))],
        out_specs=pl.BlockSpec((tm, n), lambda i: (i, 0)),
        compiler_params=_cp(limit, 1),
    )(mx)


def _identity(n, *, limit, budget, out_dtype=jnp.float32):
    n_c = _round_up(n, _LANE)
    out_isz = jnp.dtype(out_dtype).itemsize
    tm = _pick_row_tile(n, n_c * 2 * out_isz, budget)
    return pl.pallas_call(
        _identity_kernel,
        out_shape=jax.ShapeDtypeStruct((n, n), out_dtype),
        grid=(pl.cdiv(n, tm),),
        in_specs=[],
        out_specs=pl.BlockSpec((tm, n), lambda i: (i, 0)),
        compiler_params=_cp(limit, 1),
    )()


# ----------------------------- public API ----------------------------------


def normalize(mx, type, alpha=0.8, scale=False, out_dtype=jnp.float32):
    """JAX/Pallas equivalent of Normalize.forward (dense adjacency in/out)."""
    # `alpha` and `scale` are accepted but unused, exactly like the PyTorch
    # forward which never reads them.
    n = mx.shape[0]
    limit = _vmem_limit_bytes()
    budget = max(8 * _MIB, limit - 8 * _MIB)

    if type == "Identity_L":
        return _identity(n, limit=limit, budget=budget, out_dtype=out_dtype)
    if type == "LeftNorm_tildeA":
        return _left_norm(mx, limit=limit, budget=budget, out_dtype=out_dtype)
    if type in ("SymNorm_tildeA", "SymNorm_A"):
        add = type == "SymNorm_tildeA"
        in_isz = jnp.dtype(mx.dtype).itemsize
        out_isz = jnp.dtype(out_dtype).itemsize
        n_el = _round_up(n, 8) * _round_up(n, _LANE)
        # Fused single-read path when in + out + f32 working temporaries fit
        # comfortably inside the scoped VMEM budget.
        if n_el * (in_isz + out_isz + 16) <= budget:
            return _sym_fused(mx, add_self_loops=add, limit=limit,
                              out_dtype=out_dtype)
        return _sym_norm_streaming(mx, add_self_loops=add, limit=limit,
                                   budget=budget, out_dtype=out_dtype)
    raise Exception("Invalid normalization technique:", type)


# ----------------------------- self-test ------------------------------------


def _reference(mx, type):
    """Pure-JAX reference mirroring the scipy math."""
    mx = mx.astype(jnp.float32)
    n = mx.shape[0]
    if type == "Identity_L":
        return jnp.eye(n, dtype=jnp.float32)
    adj = mx + jnp.eye(n, dtype=jnp.float32) if type in (
        "SymNorm_tildeA", "LeftNorm_tildeA") else mx
    row_sum = adj.sum(axis=1)
    if type == "LeftNorm_tildeA":
        d = jnp.where(row_sum != 0, 1.0 / row_sum, 0.0)
        return d[:, None] * adj
    d = jnp.where(row_sum > 0, row_sum ** -0.5, 0.0)
    return d[:, None] * adj * d[None, :]


if __name__ == "__main__":
    key = jax.random.PRNGKey(0)
    limit = _vmem_limit_bytes()
    tiny_budget = 800_000   # forces the multi-tile streaming paths on small N

    for n in (16, 300):
        k = jax.random.fold_in(key, n)
        raw = jax.random.uniform(k, (n, n))
        adj = (raw > 0.6).astype(jnp.float32)
        adj = jnp.maximum(adj, adj.T)
        adj = adj * (1.0 - jnp.eye(n, dtype=jnp.float32))

        # Public API (SymNorm uses the fused single-read path at these sizes).
        for t in ("SymNorm_tildeA", "SymNorm_A", "LeftNorm_tildeA", "Identity_L"):
            out = normalize(adj, t)
            jax.block_until_ready(out)
            ref = _reference(adj, t)
            assert out.shape == ref.shape, f"shape mismatch for {t} (n={n})"
            assert jnp.allclose(out, ref, atol=1e-5, rtol=1e-4), \
                f"value mismatch for {t} (n={n})"

        # Explicitly exercise the large-N streaming paths (two-pass SymNorm,
        # ragged edge tiles, no pad/slice) by shrinking the tile budget.
        for t, add in (("SymNorm_tildeA", True), ("SymNorm_A", False)):
            out = _sym_norm_streaming(adj, add_self_loops=add,
                                      limit=limit, budget=tiny_budget)
            jax.block_until_ready(out)
            assert jnp.allclose(out, _reference(adj, t), atol=1e-5, rtol=1e-4), \
                f"streaming mismatch for {t} (n={n})"
        out = _left_norm(adj, limit=limit, budget=tiny_budget)
        jax.block_until_ready(out)
        assert jnp.allclose(out, _reference(adj, "LeftNorm_tildeA"),
                            atol=1e-5, rtol=1e-4), f"streaming LeftNorm (n={n})"
        out = _identity(n, limit=limit, budget=tiny_budget)
        jax.block_until_ready(out)
        assert jnp.allclose(out, _reference(adj, "Identity_L"),
                            atol=1e-5, rtol=1e-4), f"streaming Identity (n={n})"

    print("KERNEL_OK")
</pallas_src>

<mosaic_0001>
module attributes {stable_mosaic.version = 11 : i64} {
  func.func @_sym_fused_kernel(%arg0: memref<16x16xf32, #tpu.memory_space<vmem>>, %arg1: memref<16x16xf32, #tpu.memory_space<vmem>>) attributes {dimension_semantics = [], scalar_prefetch = 0 : i64, scratch_operands = 0 : i64, tpu.core_type = #tpu.core_type<tc>} {
    %c0 = arith.constant 0 : index
    %c0_0 = arith.constant 0 : index
    %0 = vector.load %arg0[%c0, %c0_0] : memref<16x16xf32, #tpu.memory_space<vmem>>, vector<16x16xf32>
    %1 = tpu.iota {dimensions = array<i32: 0>} : vector<16x16xi32>
    %2 = tpu.iota {dimensions = array<i32: 1>} : vector<16x16xi32>
    %3 = arith.cmpi eq, %1, %2 : vector<16x16xi32>
    %4 = arith.extui %3 : vector<16x16xi1> to vector<16x16xi32>
    %5 = arith.sitofp %4 : vector<16x16xi32> to vector<16x16xf32>
    %6 = arith.addf %0, %5 : vector<16x16xf32>
    %cst = arith.constant dense<0.000000e+00> : vector<16xf32>
    %7 = vector.multi_reduction <add>, %6, %cst [1] : vector<16x16xf32> to vector<16xf32>
    %8 = vector.shape_cast %7 : vector<16xf32> to vector<16x1xf32>
    %cst_1 = arith.constant 0.000000e+00 : f32
    %9 = vector.broadcast %cst_1 : f32 to vector<16x1xf32>
    %10 = arith.cmpf ogt, %8, %9 : vector<16x1xf32>
    %11 = math.rsqrt %8 : vector<16x1xf32>
    %cst_2 = arith.constant 0.000000e+00 : f32
    %12 = vector.broadcast %cst_2 : f32 to vector<16x1xf32>
    %13 = arith.select %10, %11, %12 : vector<16x1xi1>, vector<16x1xf32>
    %cst_3 = arith.constant 0.000000e+00 : f32
    %14 = vector.shape_cast %13 : vector<16x1xf32> to vector<16x1xf32>
    %15 = vector.broadcast %14 : vector<16x1xf32> to vector<16x16xf32>
    %16 = vector.broadcast %cst_3 : f32 to vector<16x16xf32>
    %17 = arith.select %3, %15, %16 : vector<16x16xi1>, vector<16x16xf32>
    %cst_4 = arith.constant dense<0.000000e+00> : vector<16xf32>
    %18 = vector.multi_reduction <add>, %17, %cst_4 [0] : vector<16x16xf32> to vector<16xf32>
    %19 = vector.shape_cast %18 : vector<16xf32> to vector<1x16xf32>
    %20 = vector.broadcast %13 : vector<16x1xf32> to vector<16x16xf32>
    %21 = arith.mulf %20, %6 : vector<16x16xf32>
    %22 = vector.broadcast %19 : vector<1x16xf32> to vector<16x16xf32>
    %23 = arith.mulf %21, %22 : vector<16x16xf32>
    %c0_5 = arith.constant 0 : index
    %c0_6 = arith.constant 0 : index
    %24 = vector.load %arg1[%c0_5, %c0_6] : memref<16x16xf32, #tpu.memory_space<vmem>>, vector<16x16xf32>
    tpu.vector_store %arg1[%c0_5, %c0_6], %23 {strides = array<i32>} : memref<16x16xf32, #tpu.memory_space<vmem>>, vector<16x16xf32>,
    return
  }
}

</mosaic_0001>

<llo_original>
// kernel: tpu_custom_call.1
$region0: #{tpu_custom_call.1}
  #allocation0 [shape = 'u32[]', space=smem, size = 0x4, offset = 0x4, fixed_abs, tag = 'smem constant byte address 0x4 - core index']
  #allocation1 [shape = 'u32[144,128]{1,0:T(1,128)}', space=vmem, size = 0x12000, scoped, tag = 'internal scratch']
  %s0 = inlined_call_operand.hbm [shape: f32[16,16], index: 0, kind: input, shape index: {}]
  %s1 = inlined_call_operand.hbm [shape: f32[16,16], index: 1, kind: output, shape index: {}]
  %s2 = sld [smem:[#allocation0]]
  $region18: #{tpu_custom_call.1} parent=0
    _
  %s4 = ssub.s32 1, %s2
  %s5 = scalar_select 0, %s4, %s2
  $region1: #{tpu_custom_call.1} parent=0
    #allocation2 [shape = 'u8[8192]{0}', space=vmem, size = 0x2000, scoped, tag = 'input window, operand 0, single buffered']
    #allocation3 [shape = 's32[1]{0}', space=sflag, size = 0x4, scoped, tag = 'scoped memory for tpu_custom_call.1']
    #allocation4 [shape = 's32[1]{0}', space=sflag, size = 0x4, scoped, tag = 'scoped memory for tpu_custom_call.1']
    #allocation5 [shape = 'u8[8192]{0}', space=vmem, size = 0x2000, scoped, tag = 'output window, operand 0, single buffered']
    %6 = vsyncpa [#allocation3], 0
    %7 = vsyncpa [#allocation4], 0
    // Predicated region
    $region2: #{tpu_custom_call.1} parent=1 // pred_check
      _
    $region3: #{tpu_custom_call.1} parent=1 // pred_check_branch
      %9 = sbr.rel (0) target = $region5
    $region4: #{tpu_custom_call.1} parent=1 // pred_region
      %s11 = ssub.s32 256, 256
      %12 = vsyncadd [#allocation3], %s11
      %s13 = sshll.u32 [#allocation2], 4
      %s14 = int_to_ptr.vmem [resolvable:$true] %s13
      %19 = dma.hbm_to_vmem [thread:$0]  %s0, 256, %s14, [#allocation3], 128, 128, 8
    $region5: #{tpu_custom_call.1} parent=1 // pred_fallthru
      _
    // Predicated region
    $region6: #{tpu_custom_call.1} parent=1 // pred_check
      _
    $region7: #{tpu_custom_call.1} parent=1 // pred_check_branch
      %21 = sbr.rel (0) target = $region9
    $region8: #{tpu_custom_call.1} parent=1 // pred_region
      %22 = dma.done [#allocation3], 256
    $region9: #{tpu_custom_call.1} parent=1 // pred_fallthru
      _
    %v23 = vld [vmem:[#allocation2] sm:$0xff]
    %v24 = vld [vmem:[#allocation2 + $0x8] sm:$0xff]
    %v25 = vlaneseq
    %v26 = vshrl.u32 %v25, 7
    %v27 = vadd.s32 %v26, 8
    %v28 = vlaneseq
    %v29 = vand.u32 %v28, 127
    %vm30 = vcmp.eq.s32.totalorder %v26, %v29
    %vm31 = vcmp.eq.s32.totalorder %v27, %v29
    %v32 = vsel %vm30, 1, 0
    %v33 = vsel %vm31, 1, 0
    %v34 = vcvt.s32.f32 %v32
    %v35 = vcvt.s32.f32 %v33
    %v36 = vadd.f32 %v23, %v34
    %v37 = vadd.f32 %v24, %v35
    %vm38 = vcmask 130048
    %v39 = vsel %vm38, %v36, 0.0
    %40 = vadd.xlane.f32.xlu0 %v39
    %v41 = vpop.xlane.xlu0 %40
    %v42 = vsel %vm38, %v37, 0.0
    %43 = vadd.xlane.f32.xlu0 %v42
    %v44 = vpop.xlane.xlu0 %43
    %vm45 = vcmp.gt.f32.partialorder %v41, 0.0
    %vm46 = vcmp.gt.f32.partialorder %v44, 0.0
    %v47 = vrsqrt.pop %v41
    %v48 = vrsqrt.pop %v44
    %v49 = vsel %vm45, %v47, 0.0
    %v50 = vsel %vm46, %v48, 0.0
    %v51 = vsel %vm30, %v49, 0.0
    %v52 = vsel %vm31, %v50, 0.0
    %v53 = vsel %vm38, %v51, 0.0
    %v54 = vsel %vm38, %v52, 0.0
    %v55 = vadd.f32 %v53, %v54
    %v56 = vrot.slane %v55, 4
    %v57 = vadd.f32 %v55, %v56
    %v58 = vrot.slane %v57, 2
    %v59 = vadd.f32 %v57, %v58
    %v60 = vrot.slane %v59, 1
    %v61 = vadd.f32 %v59, %v60
    %v62 = vmul.f32 %v49, %v36
    %v63 = vmul.f32 %v50, %v37
    %v64 = vmul.f32 %v62, %v61
    %v65 = vmul.f32 %v63, %v61
    %66 = vst.msk [vmem:[#allocation5] sm:$0xff] %vm38, %v64
    %67 = vst.msk [vmem:[#allocation5 + $0x8] sm:$0xff] %vm38, %v65
    // Predicated region
    $region10: #{tpu_custom_call.1} parent=1 // pred_check
      _
    $region11: #{tpu_custom_call.1} parent=1 // pred_check_branch
      %69 = sbr.rel (0) target = $region13
    $region12: #{tpu_custom_call.1} parent=1 // pred_region
      %s71 = ssub.s32 256, 256
      %72 = vsyncadd [#allocation4], %s71
      %s73 = sshll.u32 [#allocation5], 4
      %s74 = int_to_ptr.vmem [resolvable:$true] %s73
      %79 = dma.vmem_to_hbm [thread:$0]  %s74, 256, %s1, [#allocation4], 128, 128, 8
    $region13: #{tpu_custom_call.1} parent=1 // pred_fallthru
      _
    // Predicated region
    $region14: #{tpu_custom_call.1} parent=1 // pred_check
      _
    $region15: #{tpu_custom_call.1} parent=1 // pred_check_branch
      %81 = sbr.rel (0) target = $region17
    $region16: #{tpu_custom_call.1} parent=1 // pred_region
      %82 = dma.done [#allocation4], 256
    $region17: #{tpu_custom_call.1} parent=1 // pred_fallthru
      _
    %83 = vsyncpa [#allocation3], 1
    %84 = vsyncpa [#allocation4], 1

</llo_original>
